<compile_context>
chip_gen: v5e
topology: v5e:2x2
jax: 0.10.0
libtpu: 0.0.40
codegen_flags: <defaults>
</compile_context>

<pallas_src>
import functools
import math

import jax
import jax.numpy as jnp
from jax import lax
from jax.experimental import pallas as pl
from jax.experimental.pallas import tpu as pltpu

_INV_SQRT2 = 1.0 / math.sqrt(2.0)


def _round_up(x, m):
    return (x + m - 1) // m * m


def _gelu_erf(x):
    # Exact erf-based GELU from the reference module (kept in f32).
    return x * 0.5 * (1.0 + lax.erf(x * _INV_SQRT2))


def _bert_intermediate_kernel(x_ref, w_ref, b_ref, o_ref, *, compute_dtype):
    # x_ref: [tm, H], w_ref: [H, tn], b_ref: [1, tn], o_ref: [tm, tn]
    a = x_ref[...].astype(compute_dtype)
    w = w_ref[...].astype(compute_dtype)
    h = jnp.dot(a, w, preferred_element_type=jnp.float32)
    h = h + b_ref[...].astype(jnp.float32)
    o_ref[...] = _gelu_erf(h).astype(o_ref.dtype)


def _vmem_budget_bytes():
    try:
        cap = pltpu.get_tpu_info().vmem_capacity_bytes
    except Exception:
        cap = 64 * 1024 * 1024  # be conservative (v7x physical VMEM)
    return int(cap * 3 // 4)    # leave headroom for Mosaic internal scratch


def bert_intermediate(hidden_states, weight_t, bias, *,
                      compute_dtype=jnp.bfloat16, tm_pref=512, tn_pref=512):
    """BertIntermediate forward.

    hidden_states: [..., H]; weight_t: [H, I] (transposed torch weight); bias: [I].
    Returns gelu(hidden_states @ weight_t + bias) with shape [..., I].
    compute_dtype controls the MXU operand dtype (accumulation is always f32);
    pass jnp.float32 for bit-exact f32 semantics.
    """
    orig_shape = hidden_states.shape
    H = orig_shape[-1]
    I = weight_t.shape[1]
    out_dtype = hidden_states.dtype

    x = hidden_states.reshape(-1, H)
    M = x.shape[0]

    # Cast the (small, resident) weight once in the wrapper: halves its DMA /
    # VMEM footprint and avoids a per-grid-step cast.  Activations are cast
    # per-tile inside the kernel (no extra HBM pass over x).
    if weight_t.dtype != compute_dtype:
        weight_t = weight_t.astype(compute_dtype)
    bias2d = bias.astype(jnp.float32).reshape(1, I)

    x_bytes = jnp.dtype(x.dtype).itemsize
    w_bytes = jnp.dtype(compute_dtype).itemsize
    o_bytes = jnp.dtype(out_dtype).itemsize

    vmem_budget = _vmem_budget_bytes()

    # ---- token (M) tile selection; avoid padding x in the common case ----
    sub_m = 16 if x.dtype == jnp.bfloat16 else 8
    if M >= tm_pref and M % tm_pref == 0:
        tm, Mp = tm_pref, M
    elif M <= tm_pref:
        Mp = _round_up(M, sub_m)
        tm = Mp
    else:
        tm = tm_pref
        Mp = _round_up(M, tm)  # rare ragged-M fallback (small zero pad)
    if Mp != M:
        x = jnp.pad(x, ((0, Mp - M), (0, 0)))

    kern = functools.partial(_bert_intermediate_kernel,
                             compute_dtype=compute_dtype)

    # ---- Plan A: weight fully VMEM-resident (double-buffered worst case) ----
    resident_bytes = (2 * w_bytes * H * I      # weight
                      + 2 * x_bytes * tm * H   # streamed x tiles
                      + 2 * o_bytes * tm * I   # streamed out tiles
                      + 2 * 4 * _round_up(I, 128))  # bias row
    plan_a = resident_bytes <= vmem_budget

    if plan_a:
        Ip = I
        grid = (Mp // tm,)
        in_specs = [
            pl.BlockSpec((tm, H), lambda i: (i, 0)),   # x tile streamed over M
            pl.BlockSpec((H, I), lambda i: (0, 0)),    # constant -> DMA'd once
            pl.BlockSpec((1, I), lambda i: (0, 0)),    # constant -> DMA'd once
        ]
        out_specs = pl.BlockSpec((tm, I), lambda i: (i, 0))
        dim_sem = ("parallel",)
        bytes_accessed = (x_bytes * M * H + w_bytes * H * I + 4 * I
                          + o_bytes * M * I)
        vmem_limit = min(vmem_budget, resident_bytes + (8 << 20))
    else:
        # ---- Plan B: I-outer / M-inner so each weight slab is DMA'd once ----
        if I >= tn_pref and I % tn_pref == 0:
            tn, Ip = tn_pref, I
        elif I <= tn_pref:
            tn, Ip = I, I
        else:
            tn = tn_pref
            Ip = _round_up(I, tn)
        if Ip != I:
            weight_t = jnp.pad(weight_t, ((0, 0), (0, Ip - I)))
            bias2d = jnp.pad(bias2d, ((0, 0), (0, Ip - I)))
        grid = (Ip // tn, Mp // tm)  # j (intermediate) outer, i (tokens) inner
        in_specs = [
            pl.BlockSpec((tm, H), lambda j, i: (i, 0)),
            pl.BlockSpec((H, tn), lambda j, i: (0, j)),  # constant along inner i
            pl.BlockSpec((1, tn), lambda j, i: (0, j)),
        ]
        out_specs = pl.BlockSpec((tm, tn), lambda j, i: (i, j))
        dim_sem = ("parallel", "parallel")
        bytes_accessed = (x_bytes * M * H * (Ip // tn) + w_bytes * H * Ip
                          + 4 * Ip + o_bytes * M * Ip)
        block_bytes = 2 * (x_bytes * tm * H + w_bytes * H * tn + 4 * tn
                           + o_bytes * tm * tn)
        vmem_limit = min(vmem_budget, block_bytes + (8 << 20))

    cost = pl.CostEstimate(
        flops=2 * M * H * I,
        transcendentals=M * I,
        bytes_accessed=int(bytes_accessed),
    )

    out = pl.pallas_call(
        kern,
        out_shape=jax.ShapeDtypeStruct((Mp, Ip), out_dtype),
        grid_spec=pltpu.PrefetchScalarGridSpec(
            num_scalar_prefetch=0,
            grid=grid,
            in_specs=in_specs,
            out_specs=out_specs,
        ),
        compiler_params=pltpu.CompilerParams(
            dimension_semantics=dim_sem,
            vmem_limit_bytes=int(vmem_limit),
        ),
        cost_estimate=cost,
    )(x, weight_t, bias2d)

    out = out[:M, :I]
    return out.reshape(orig_shape[:-1] + (I,))


if __name__ == "__main__":
    key = jax.random.PRNGKey(0)
    k_x, k_w, k_b = jax.random.split(key, 3)

    # Small synthetic shapes consistent with BertIntermediate:
    # batch=2, seq=8, hidden=32, intermediate=4*hidden=128.
    B, S, H = 2, 8, 32
    I = 4 * H

    hidden_states = jax.random.normal(k_x, (B, S, H), dtype=jnp.float32)

    # nn.Linear(H, I) default init: U(-1/sqrt(H), 1/sqrt(H)); torch weight is [I, H].
    bound = 1.0 / (H ** 0.5)
    weight = jax.random.uniform(k_w, (I, H), dtype=jnp.float32,
                                minval=-bound, maxval=bound)
    bias = jax.random.uniform(k_b, (I,), dtype=jnp.float32,
                              minval=-bound, maxval=bound)
    weight_t = weight.T  # [H, I]

    out = bert_intermediate(hidden_states, weight_t, bias)
    out = jax.block_until_ready(out)
    assert out.shape == (B, S, I)

    # Reference 1: same bf16-operand / f32-accumulate path (tight check).
    h_m = jnp.dot(hidden_states.astype(jnp.bfloat16),
                  weight_t.astype(jnp.bfloat16),
                  preferred_element_type=jnp.float32) + bias
    ref_m = h_m * 0.5 * (1.0 + jax.scipy.special.erf(h_m / math.sqrt(2.0)))
    assert jnp.allclose(out, ref_m.astype(out.dtype), atol=1e-3, rtol=1e-3)

    # Reference 2: exact f32 module semantics (loose check: bf16 MXU operands).
    h_f = hidden_states @ weight_t + bias
    ref_f = h_f * 0.5 * (1.0 + jax.scipy.special.erf(h_f / math.sqrt(2.0)))
    assert jnp.allclose(out, ref_f, atol=2e-2, rtol=2e-2)

    print("KERNEL_OK")
</pallas_src>

<mosaic_0001>
module attributes {stable_mosaic.version = 11 : i64} {
  func.func @_bert_intermediate_kernel(%arg0: i32, %arg1: memref<16x32xf32, #tpu.memory_space<vmem>>, %arg2: memref<32x128xbf16, #tpu.memory_space<vmem>>, %arg3: memref<1x128xf32, #tpu.memory_space<vmem>>, %arg4: memref<16x128xf32, #tpu.memory_space<vmem>>) attributes {dimension_semantics = [#tpu.dimension_semantics<parallel>], iteration_bounds = array<i64: 1>, scalar_prefetch = 0 : i64, scratch_operands = 0 : i64, tpu.core_type = #tpu.core_type<tc>, window_params = [{transform_indices = @transform_0, window_bounds = array<i64: 16, 32>}, {pipeline_mode = #tpu.pipeline_mode<synchronous>, transform_indices = @transform_1, window_bounds = array<i64: 32, 128>}, {pipeline_mode = #tpu.pipeline_mode<synchronous>, transform_indices = @transform_2, window_bounds = array<i64: 1, 128>}, {transform_indices = @transform_3, window_bounds = array<i64: 16, 128>}]} {
    %c0 = arith.constant 0 : index
    %c0_0 = arith.constant 0 : index
    %0 = vector.load %arg1[%c0, %c0_0] : memref<16x32xf32, #tpu.memory_space<vmem>>, vector<16x32xf32>
    %1 = arith.truncf %0 : vector<16x32xf32> to vector<16x32xbf16>
    %c0_1 = arith.constant 0 : index
    %c0_2 = arith.constant 0 : index
    %2 = vector.load %arg2[%c0_1, %c0_2] : memref<32x128xbf16, #tpu.memory_space<vmem>>, vector<32x128xbf16>
    %cst = arith.constant dense<0.000000e+00> : vector<16x128xf32>
    %3 = tpu.matmul %1, %2, %cst {dimension_numbers = #tpu.dot_dimension_numbers<[1], [0], [0], [1], [0, 0, 1, 1], [], []>} : vector<16x32xbf16>, vector<32x128xbf16>, vector<16x128xf32> -> vector<16x128xf32>
    %c0_3 = arith.constant 0 : index
    %c0_4 = arith.constant 0 : index
    %4 = vector.load %arg3[%c0_3, %c0_4] : memref<1x128xf32, #tpu.memory_space<vmem>>, vector<1x128xf32>
    %5 = vector.broadcast %4 : vector<1x128xf32> to vector<16x128xf32>
    %6 = arith.addf %3, %5 : vector<16x128xf32>
    %cst_5 = arith.constant 5.000000e-01 : f32
    %7 = vector.broadcast %cst_5 : f32 to vector<16x128xf32>
    %8 = arith.mulf %6, %7 : vector<16x128xf32>
    %cst_6 = arith.constant 0.707106769 : f32
    %9 = vector.broadcast %cst_6 : f32 to vector<16x128xf32>
    %10 = arith.mulf %6, %9 : vector<16x128xf32>
    %11 = math.erf %10 : vector<16x128xf32>
    %cst_7 = arith.constant 1.000000e+00 : f32
    %12 = vector.broadcast %cst_7 : f32 to vector<16x128xf32>
    %13 = arith.addf %12, %11 : vector<16x128xf32>
    %14 = arith.mulf %8, %13 : vector<16x128xf32>
    %c0_8 = arith.constant 0 : index
    %c0_9 = arith.constant 0 : index
    %15 = vector.load %arg4[%c0_8, %c0_9] : memref<16x128xf32, #tpu.memory_space<vmem>>, vector<16x128xf32>
    tpu.vector_store %arg4[%c0_8, %c0_9], %14 {strides = array<i32>} : memref<16x128xf32, #tpu.memory_space<vmem>>, vector<16x128xf32>,
    return
  }
  func.func @transform_0(%arg0: i32) -> (i32, i32) {
    %c0_i32 = arith.constant 0 : i32
    %c0_i32_0 = arith.constant 0 : i32
    return %arg0, %c0_i32 : i32, i32
  }
  func.func @transform_1(%arg0: i32) -> (i32, i32) {
    %c0_i32 = arith.constant 0 : i32
    %c0_i32_0 = arith.constant 0 : i32
    %c0_i32_1 = arith.constant 0 : i32
    return %c0_i32, %c0_i32_0 : i32, i32
  }
  func.func @transform_2(%arg0: i32) -> (i32, i32) {
    %c0_i32 = arith.constant 0 : i32
    %c0_i32_0 = arith.constant 0 : i32
    %c0_i32_1 = arith.constant 0 : i32
    return %c0_i32, %c0_i32_0 : i32, i32
  }
  func.func @transform_3(%arg0: i32) -> (i32, i32) {
    %c0_i32 = arith.constant 0 : i32
    %c0_i32_0 = arith.constant 0 : i32
    return %arg0, %c0_i32 : i32, i32
  }
}

</mosaic_0001>

<llo_original>
// kernel: tpu_custom_call.1
$region0: #{tpu_custom_call.1}
  #allocation0 [shape = 'u32[]', space=smem, size = 0x4, offset = 0x4, fixed_abs, tag = 'smem constant byte address 0x4 - core index']
  #allocation1 [shape = 'u32[72,128]{1,0:T(1,128)}', space=vmem, size = 0x9000, scoped, tag = 'internal scratch']
  %s0 = inlined_call_operand.hbm [shape: f32[16,32], index: 0, kind: input, shape index: {}]
  %s1 = inlined_call_operand.hbm [shape: bf16[32,128], index: 1, kind: input, shape index: {}]
  %s2 = inlined_call_operand.vmem [shape: f32[1,128], index: 2, kind: input, shape index: {}]
  %s3 = inlined_call_operand.hbm [shape: f32[16,128], index: 3, kind: output, shape index: {}]
  %s4 = sld [smem:[#allocation0]]
  $region30: #{tpu_custom_call.1} parent=0
    _
  %s6 = ssub.s32 1, %s4
  %s7 = scalar_select 0, %s6, %s4
  $region1: #{tpu_custom_call.1} parent=0
    #allocation2 [shape = 'u8[8192]{0}', space=vmem, size = 0x2000, scoped, tag = 'input window, operand 0, single buffered']
    #allocation3 [shape = 's32[1]{0}', space=sflag, size = 0x4, scoped, tag = 'scoped memory for tpu_custom_call.1']
    #allocation4 [shape = 's32[1]{0}', space=sflag, size = 0x4, scoped, tag = 'scoped memory for tpu_custom_call.1']
    #allocation5 [shape = 'u8[8192]{0}', space=vmem, size = 0x2000, scoped, tag = 'input window, operand 1, single buffered']
    #allocation6 [shape = 's32[1]{0}', space=sflag, size = 0x4, scoped, tag = 'scoped memory for tpu_custom_call.1']
    #allocation7 [shape = 'u8[8192]{0}', space=vmem, size = 0x2000, scoped, tag = 'output window, operand 0, single buffered']
    %8 = vsyncpa [#allocation3], 0
    %9 = vsyncpa [#allocation6], 0
    %10 = vsyncpa [#allocation4], 0
    // Predicated region
    $region2: #{tpu_custom_call.1} parent=1 // pred_check
      _
    $region3: #{tpu_custom_call.1} parent=1 // pred_check_branch
      %12 = sbr.rel (0) target = $region5
    $region4: #{tpu_custom_call.1} parent=1 // pred_region
      %14 = vsyncadd [#allocation3], 0
      %s15 = sshll.u32 %s0, 4
      %s16 = int_to_ptr.hbm [resolvable:$true] %s15
      %s17 = sshll.u32 [#allocation2], 4
      %s18 = int_to_ptr.vmem [resolvable:$true] %s17
      %23 = dma.hbm_to_vmem [thread:$0]  %s16, 256, %s18, [#allocation3], 128, 128, 8
    $region5: #{tpu_custom_call.1} parent=1 // pred_fallthru
      _
    // Predicated region
    $region6: #{tpu_custom_call.1} parent=1 // pred_check
      _
    $region7: #{tpu_custom_call.1} parent=1 // pred_check_branch
      %25 = sbr.rel (0) target = $region9
    $region8: #{tpu_custom_call.1} parent=1 // pred_region
      %27 = vsyncadd [#allocation6], 0
      %s28 = sshll.u32 %s1, 4
      %s29 = int_to_ptr.hbm [resolvable:$true] %s28
      %s30 = sshll.u32 [#allocation5], 4
      %s31 = int_to_ptr.vmem [resolvable:$true] %s30
      %36 = dma.hbm_to_vmem [thread:$0]  %s29, 256, %s31, [#allocation6], 64, 64, 4
    $region9: #{tpu_custom_call.1} parent=1 // pred_fallthru
      _
    // Predicated region
    $region10: #{tpu_custom_call.1} parent=1 // pred_check
      _
    $region11: #{tpu_custom_call.1} parent=1 // pred_check_branch
      %38 = sbr.rel (0) target = $region13
    $region12: #{tpu_custom_call.1} parent=1 // pred_region
      _
    $region13: #{tpu_custom_call.1} parent=1 // pred_fallthru
      _
    // Predicated region
    $region14: #{tpu_custom_call.1} parent=1 // pred_check
      _
    $region15: #{tpu_custom_call.1} parent=1 // pred_check_branch
      %40 = sbr.rel (0) target = $region17
    $region16: #{tpu_custom_call.1} parent=1 // pred_region
      %42 = dma.done [#allocation3], 256
    $region17: #{tpu_custom_call.1} parent=1 // pred_fallthru
      _
    // Predicated region
    $region18: #{tpu_custom_call.1} parent=1 // pred_check
      _
    $region19: #{tpu_custom_call.1} parent=1 // pred_check_branch
      %44 = sbr.rel (0) target = $region21
    $region20: #{tpu_custom_call.1} parent=1 // pred_region
      %46 = dma.done [#allocation6], 256
    $region21: #{tpu_custom_call.1} parent=1 // pred_fallthru
      _
    %v48 = vld [vmem:[#allocation2] sm:$0xff]
    %v49 = vld [vmem:[#allocation2 + $0x8] sm:$0xff]
    %v50 = vpack.c.bf16 %v49, %v48
    %v51 = vld [vmem:[#allocation5] sm:$0xf]
    %v52 = vld [vmem:[#allocation5 + $0x4] sm:$0xf]
    %v53 = vld [vmem:[#allocation5 + $0x8] sm:$0xf]
    %v54 = vld [vmem:[#allocation5 + $0xc] sm:$0xf]
    %v55 = vld [vmem:[%s2] sm:$0x1]
    %v57 = vperm.slane %v55, 0
    %v63 = vunpack.c.l.b16 %v51
    %v64 = vunpack.c.l.b16 %v52
    %v65 = vunpack.c.l.b16 %v53
    %v66 = vunpack.c.l.b16 %v54
    %v67 = vpack.c.b16 %v64, %v63
    %v68 = vpack.c.b16 %v66, %v65
    %vm71 = vcmask 261120
    %v73 = vsel %vm71, %v50, 0
    %75 = vmatpush.bf16.msra.mxu0 0
    %76 = vmatpush.bf16.msra.mxu0 0
    %77 = vmatpush.bf16.msra.mxu0 0
    %78 = vmatpush.bf16.msra.mxu0 0
    %79 = vmatpush.bf16.msra.mxu0 0
    %80 = vmatpush.bf16.msra.mxu0 0
    %81 = vmatpush.bf16.msra.mxu0 %v68
    %82 = vmatpush.bf16.msra.mxu0 %v67
    %83 = vmatmul.bf16.gmra.mxu0 %v73
    %v84 = vpop.f32.mrf.mxu0
    %v85 = vadd.f32 %v57, %v84
    %v86 = vpop.f32.mrf.mxu0
    %v87 = vadd.f32 %v57, %v86
    %88 = vdwg.mxu0
    %v89 = vmul.f32 %v85, 0.5
    %v90 = vmul.f32 %v87, 0.5
    %v91 = vmul.f32 %v85, 0.70710677
    %v92 = vmul.f32 %v87, 0.70710677
    %v93 = vmul.f32 %v91, %v91
    %v94 = vmin.f32 16.0, %v93
    %v95 = vmul.f32 %v94, 2.1237322e-06
    %v96 = vadd.f32 %v95, 0.00028619796
    %v97 = vmul.f32 %v94, %v96
    %v98 = vadd.f32 %v97, 0.0036580483
    %v99 = vmul.f32 %v94, %v98
    %v100 = vadd.f32 %v99, 0.05243302
    %v101 = vmul.f32 %v94, %v100
    %v102 = vadd.f32 %v101, 0.18741608
    %v103 = vmul.f32 %v94, %v102
    %v104 = vadd.f32 %v103, 1.1283791
    %v105 = vmul.f32 %v91, %v104
    %v106 = vmul.f32 %v94, 3.8918573e-05
    %v107 = vadd.f32 %v106, 0.001143296
    %v108 = vmul.f32 %v94, %v107
    %v109 = vadd.f32 %v108, 0.014752088
    %v110 = vmul.f32 %v94, %v109
    %v111 = vadd.f32 %v110, 0.112945676
    %v112 = vmul.f32 %v94, %v111
    %v113 = vadd.f32 %v112, 0.4994258
    %v114 = vmul.f32 %v94, %v113
    %v115 = vadd.f32 %v114, 1.0
    %v116 = vrcp.pop %v115
    %v117 = vmul.f32 %v115, %v116
    %v118 = vsub.f32 1.0, %v117
    %v119 = vmul.f32 %v116, %v118
    %v120 = vadd.f32 %v116, %v119
    %vm121 = vweird.f32 %v115
    %vm122 = vweird.f32 %v116
    %vm123 = vmor %vm121, %vm122
    %v124 = vsel %vm123, %v116, %v120
    %v125 = vand.u32 2147483647, %v115
    %vm126 = vcmp.eq.f32.partialorder %v125, 8.507059e+37
    %v127 = vand.u32 %v115, 2147483648
    %v128 = vor.u32 1.1754944e-38, %v127
    %v129 = vsel %vm126, %v128, %v124
    %v130 = vmul.f32 %v105, %v129
    %v131 = vmin.f32 %v130, 1.0
    %v132 = vmax.f32 %v131, -1.0
    %v133 = vmul.f32 %v92, %v92
    %v134 = vmin.f32 16.0, %v133
    %v135 = vmul.f32 %v134, 2.1237322e-06
    %v136 = vadd.f32 %v135, 0.00028619796
    %v137 = vmul.f32 %v134, %v136
    %v138 = vadd.f32 %v137, 0.0036580483
    %v139 = vmul.f32 %v134, %v138
    %v140 = vadd.f32 %v139, 0.05243302
    %v141 = vmul.f32 %v134, %v140
    %v142 = vadd.f32 %v141, 0.18741608
    %v143 = vmul.f32 %v134, %v142
    %v144 = vadd.f32 %v143, 1.1283791
    %v145 = vmul.f32 %v92, %v144
    %v146 = vmul.f32 %v134, 3.8918573e-05
    %v147 = vadd.f32 %v146, 0.001143296
    %v148 = vmul.f32 %v134, %v147
    %v149 = vadd.f32 %v148, 0.014752088
    %v150 = vmul.f32 %v134, %v149
    %v151 = vadd.f32 %v150, 0.112945676
    %v152 = vmul.f32 %v134, %v151
    %v153 = vadd.f32 %v152, 0.4994258
    %v154 = vmul.f32 %v134, %v153
    %v155 = vadd.f32 %v154, 1.0
    %v156 = vrcp.pop %v155
    %v157 = vmul.f32 %v155, %v156
    %v158 = vsub.f32 1.0, %v157
    %v159 = vmul.f32 %v156, %v158
    %v160 = vadd.f32 %v156, %v159
    %vm161 = vweird.f32 %v155
    %vm162 = vweird.f32 %v156
    %vm163 = vmor %vm161, %vm162
    %v164 = vsel %vm163, %v156, %v160
    %v165 = vand.u32 2147483647, %v155
    %vm166 = vcmp.eq.f32.partialorder %v165, 8.507059e+37
    %v167 = vand.u32 %v155, 2147483648
    %v168 = vor.u32 1.1754944e-38, %v167
    %v169 = vsel %vm166, %v168, %v164
    %v170 = vmul.f32 %v145, %v169
    %v171 = vmin.f32 %v170, 1.0
    %v172 = vmax.f32 %v171, -1.0
    %v173 = vadd.f32 %v132, 1.0
    %v174 = vadd.f32 %v172, 1.0
    %v175 = vmul.f32 %v89, %v173
    %v176 = vmul.f32 %v90, %v174
    %177 = vst [vmem:[#allocation7] sm:$0xff] %v175
    %178 = vst [vmem:[#allocation7 + $0x8] sm:$0xff] %v176
    // Predicated region
    $region22: #{tpu_custom_call.1} parent=1 // pred_check
      _
    $region23: #{tpu_custom_call.1} parent=1 // pred_check_branch
      %180 = sbr.rel (0) target = $region25
    $region24: #{tpu_custom_call.1} parent=1 // pred_region
      %182 = vsyncadd [#allocation4], 0
      %s183 = sshll.u32 [#allocation7], 4
      %s184 = int_to_ptr.vmem [resolvable:$true] %s183
      %s185 = sshll.u32 %s3, 4
      %s186 = int_to_ptr.hbm [resolvable:$true] %s185
      %191 = dma.vmem_to_hbm [thread:$0]  %s184, 256, %s186, [#allocation4], 128, 128, 8
    $region25: #{tpu_custom_call.1} parent=1 // pred_fallthru
      _
    // Predicated region
    $region26: #{tpu_custom_call.1} parent=1 // pred_check
      _
    $region27: #{tpu_custom_call.1} parent=1 // pred_check_branch
      %193 = sbr.rel (0) target = $region29
    $region28: #{tpu_custom_call.1} parent=1 // pred_region
      %195 = dma.done [#allocation4], 256
    $region29: #{tpu_custom_call.1} parent=1 // pred_fallthru
      _
    %196 = vsyncpa [#allocation3], 1
    %197 = vsyncpa [#allocation6], 1
    %198 = vsyncpa [#allocation4], 1

</llo_original>
